<compile_context>
chip_gen: v5e
topology: v5e:2x2
jax: 0.10.0
libtpu: 0.0.40
codegen_flags: <defaults>
</compile_context>

<pallas_src>
import functools

import jax
import jax.numpy as jnp
from jax.experimental import pallas as pl
from jax.experimental.pallas import tpu as pltpu


def _one_conv_kernel(x_ref, mask_ref, w_ref, b_ref, out_ref, *, H, W, G0, G0p,
                     G, Nb):
    # x_ref   : (Nb, G0, HW)    input images, channels on sublanes, HW on lanes
    # mask_ref: (9, Nb*HW)      precomputed per-tap zero-padding masks
    # w_ref   : (G, 9*G0p)      im2col-stacked conv weights (channel-padded)
    # b_ref   : (G, 1)          conv bias (f32)
    # out_ref : (Nb, G0+G, HW)  concat([x, leaky_relu(conv(x))]) along channels
    HW = H * W
    NbHW = Nb * HW

    # Lane-axis batching: place the Nb images side-by-side on the lane axis.
    # HW is a multiple of 128 so every image boundary is vreg-aligned.
    if Nb == 1:
        x = x_ref[0]                                        # (G0, HW)
    else:
        x = jnp.concatenate([x_ref[i] for i in range(Nb)], axis=1)  # (G0, NbHW)

    # Pad the channel (sublane) axis ONCE to a multiple of 8 so each per-tap
    # chunk of the im2col patch matrix is 8-sublane aligned (plain vreg
    # assembly instead of XLU sublane shuffles in the big concat below).
    if G0p != G0:
        x = jnp.concatenate(
            [x, jnp.zeros((G0p - G0, NbHW), dtype=x.dtype)], axis=0)  # (G0p, NbHW)

    # Build the (9*G0p, NbHW) im2col patch matrix.  Tap (dy, dx) needs
    # x[c, p + s] with s = (dy-1)*W + (dx-1); pltpu.roll by -s (XLU lane
    # rotation, separate bundle slot) provides it, and the precomputed tap
    # mask zeroes every position whose source lies outside its own image
    # (Conv2d padding=1 semantics; this also kills cross-image / wrap-around
    # leakage, since |s| <= W+1 means leaking positions are always border
    # positions).
    taps = []
    for t in range(9):
        dy, dx = t // 3, t % 3
        s = (dy - 1) * W + (dx - 1)
        tap = x if s == 0 else pltpu.roll(x, shift=(-s) % NbHW, axis=1)
        if not (dy == 1 and dx == 1):                       # center tap needs no mask
            tap = tap * mask_ref[t:t + 1, :]                # one VPU multiply per tap
        taps.append(tap)
    patches = jnp.concatenate(taps, axis=0)                 # (9*G0p, NbHW)

    # Single fused MXU matmul: (G, 9*G0p) x (9*G0p, NbHW) -> (G, NbHW), f32 acc.
    conv = jax.lax.dot_general(
        w_ref[...], patches,
        dimension_numbers=(((1,), (0,)), ((), ())),
        preferred_element_type=jnp.float32,
    )

    # Fused epilogue in f32 vregs: bias + LeakyReLU(0.1).
    conv = conv + b_ref[...]                                # (G, 1) broadcasts
    conv = jnp.where(conv >= 0, conv, 0.1 * conv)
    conv = conv.astype(out_ref.dtype)

    # Channel-concat via direct lane-dense stores (no misaligned concat
    # temporary, minimal vreg->VMEM traffic).
    for i in range(Nb):
        out_ref[i, 0:G0, :] = x_ref[i].astype(out_ref.dtype)
        out_ref[i, G0:G0 + G, :] = conv[:, i * HW:(i + 1) * HW]


def _default_grid_steps(N):
    # v7x has 2 TensorCores per chip: keep (at most) 2 "parallel" grid steps so
    # both get work.  On single-TC v5e/v6e pass num_grid_steps=1 to collapse
    # the per-step pipeline overhead entirely (biggest wall-clock lever at
    # these tiny tile sizes).
    if N == 1:
        return 1
    if N % 2 == 0:
        return 2
    return N


def one_conv_forward(x_nchw, weight, bias, *, num_grid_steps=None):
    """x_nchw: (N, G0, H, W); weight: (G, G0, 3, 3); bias: (G,).

    Returns (N, G0 + G, H, W), matching the PyTorch module's forward.
    """
    N, G0, H, W = x_nchw.shape
    G = weight.shape[0]
    HW = H * W
    G0p = ((G0 + 7) // 8) * 8            # channel pad -> 8-sublane alignment

    if num_grid_steps is None:
        num_grid_steps = _default_grid_steps(N)
    assert N % num_grid_steps == 0, (N, num_grid_steps)
    Nb = N // num_grid_steps             # images per grid step (on the lane axis)

    # Free contiguous reshape: NCHW -> (N, C, H*W).  No transposes, no pad of x.
    x_flat = x_nchw.reshape(N, G0, HW)

    # im2col-stacked weights, tap-major, channel chunk zero-padded to G0p:
    #   w_mat[g, t*G0p + c] = weight[g, c, dy, dx], t = dy*3 + dx, c < G0.
    w_mat = jnp.transpose(weight, (0, 2, 3, 1)).reshape(G, 9, G0)
    w_mat = jnp.pad(w_mat, ((0, 0), (0, 0), (0, G0p - G0)))
    w_mat = w_mat.reshape(G, 9 * G0p).astype(x_nchw.dtype)
    b_col = bias.reshape(G, 1).astype(jnp.float32)

    # Precomputed per-tap border masks (zero-padding semantics), tiled per
    # image along the lane axis so no int compares / logical ops run in-kernel.
    idx = jnp.arange(HW, dtype=jnp.int32)
    row, col = idx // W, idx % W
    tap_masks = []
    for dy in range(3):
        for dx in range(3):
            m = jnp.ones((HW,), dtype=bool)
            if dy == 0:
                m = m & (row >= 1)
            if dy == 2:
                m = m & (row <= H - 2)
            if dx == 0:
                m = m & (col >= 1)
            if dx == 2:
                m = m & (col <= W - 2)
            tap_masks.append(m)
    masks = jnp.stack(tap_masks, axis=0).astype(x_nchw.dtype)   # (9, HW)
    masks = jnp.tile(masks, (1, Nb))                            # (9, Nb*HW)

    kernel = functools.partial(_one_conv_kernel, H=H, W=W, G0=G0, G0p=G0p,
                               G=G, Nb=Nb)

    out_flat = pl.pallas_call(
        kernel,
        out_shape=jax.ShapeDtypeStruct((N, G0 + G, HW), x_nchw.dtype),
        grid_spec=pltpu.PrefetchScalarGridSpec(
            num_scalar_prefetch=0,
            grid=(num_grid_steps,),
            in_specs=[
                pl.BlockSpec((Nb, G0, HW), lambda n: (n, 0, 0)),
                pl.BlockSpec((9, Nb * HW), lambda n: (0, 0)),
                pl.BlockSpec((G, 9 * G0p), lambda n: (0, 0)),
                pl.BlockSpec((G, 1), lambda n: (0, 0)),
            ],
            out_specs=pl.BlockSpec((Nb, G0 + G, HW), lambda n: (n, 0, 0)),
        ),
        compiler_params=pltpu.CompilerParams(
            dimension_semantics=("parallel",)),
    )(x_flat, masks, w_mat, b_col)

    return out_flat.reshape(N, G0 + G, H, W)


def _reference(x_nchw, weight, bias):
    """Pure-JAX reference mirroring the PyTorch forward."""
    conv = jax.lax.conv_general_dilated(
        x_nchw, weight,
        window_strides=(1, 1), padding=((1, 1), (1, 1)),
        dimension_numbers=("NCHW", "OIHW", "NCHW"),
    ) + bias[None, :, None, None]
    act = jnp.where(conv >= 0, conv, 0.1 * conv)
    return jnp.concatenate([x_nchw, act], axis=1)


if __name__ == "__main__":
    N, G0, G, H, W = 2, 4, 8, 16, 16

    key = jax.random.PRNGKey(0)
    kx, kw, kb = jax.random.split(key, 3)
    x = jax.random.normal(kx, (N, G0, H, W), dtype=jnp.float32)
    # Deterministic synthetic "Conv2d" parameters (not a checkpoint).
    weight = jax.random.normal(kw, (G, G0, 3, 3), dtype=jnp.float32) * 0.1
    bias = jax.random.normal(kb, (G,), dtype=jnp.float32) * 0.1

    ref = _reference(x, weight, bias)

    # Default config: 2 "parallel" grid steps (keeps both v7x TensorCores busy).
    out = jax.block_until_ready(one_conv_forward(x, weight, bias))
    assert out.shape == (N, G0 + G, H, W), out.shape
    assert jnp.allclose(out, ref, atol=1e-4, rtol=1e-4), "mismatch vs reference"

    # Fully collapsed grid: whole batch on the lane axis in one step — the
    # preferred configuration on single-TensorCore v5e / v6e.
    out1 = jax.block_until_ready(
        one_conv_forward(x, weight, bias, num_grid_steps=1))
    assert jnp.allclose(out1, ref, atol=1e-4, rtol=1e-4), "mismatch (collapsed grid)"

    print("KERNEL_OK")
</pallas_src>

<mosaic_0001>
module attributes {stable_mosaic.version = 11 : i64} {
  func.func @_one_conv_kernel(%arg0: i32, %arg1: memref<1x4x256xf32, #tpu.memory_space<vmem>>, %arg2: memref<9x256xf32, #tpu.memory_space<vmem>>, %arg3: memref<8x72xf32, #tpu.memory_space<vmem>>, %arg4: memref<8x1xf32, #tpu.memory_space<vmem>>, %arg5: memref<1x12x256xf32, #tpu.memory_space<vmem>>) attributes {dimension_semantics = [#tpu.dimension_semantics<parallel>], iteration_bounds = array<i64: 2>, scalar_prefetch = 0 : i64, scratch_operands = 0 : i64, tpu.core_type = #tpu.core_type<tc>, window_params = [{transform_indices = @transform_0, window_bounds = array<i64: 1, 4, 256>}, {pipeline_mode = #tpu.pipeline_mode<synchronous>, transform_indices = @transform_1, window_bounds = array<i64: 9, 256>}, {pipeline_mode = #tpu.pipeline_mode<synchronous>, transform_indices = @transform_2, window_bounds = array<i64: 8, 72>}, {pipeline_mode = #tpu.pipeline_mode<synchronous>, transform_indices = @transform_3, window_bounds = array<i64: 8, 1>}, {transform_indices = @transform_4, window_bounds = array<i64: 1, 12, 256>}]} {
    %c0 = arith.constant 0 : index
    %c0_0 = arith.constant 0 : index
    %c0_1 = arith.constant 0 : index
    %0 = vector.load %arg1[%c0, %c0_0, %c0_1] : memref<1x4x256xf32, #tpu.memory_space<vmem>>, vector<1x4x256xf32>
    %1 = vector.shape_cast %0 : vector<1x4x256xf32> to vector<4x256xf32>
    %cst = arith.constant 0.000000e+00 : f32
    %2 = vector.broadcast %cst : f32 to vector<4x256xf32>
    %3 = tpu.concatenate %1, %2 in 0 : vector<4x256xf32>, vector<4x256xf32> -> vector<8x256xf32>
    %c17_i32 = arith.constant 17 : i32
    %4 = tpu.dynamic_rotate %3 by %c17_i32 dim 1 : vector<8x256xf32>, i32 -> vector<8x256xf32>
    %c0_2 = arith.constant 0 : index
    %c0_3 = arith.constant 0 : index
    %5 = vector.load %arg2[%c0_2, %c0_3] : memref<9x256xf32, #tpu.memory_space<vmem>>, vector<1x256xf32>
    %6 = vector.broadcast %5 : vector<1x256xf32> to vector<8x256xf32>
    %7 = arith.mulf %4, %6 : vector<8x256xf32>
    %c16_i32 = arith.constant 16 : i32
    %8 = tpu.dynamic_rotate %3 by %c16_i32 dim 1 : vector<8x256xf32>, i32 -> vector<8x256xf32>
    %c1 = arith.constant 1 : index
    %c0_4 = arith.constant 0 : index
    %9 = vector.load %arg2[%c1, %c0_4] : memref<9x256xf32, #tpu.memory_space<vmem>>, vector<1x256xf32>
    %10 = vector.broadcast %9 : vector<1x256xf32> to vector<8x256xf32>
    %11 = arith.mulf %8, %10 : vector<8x256xf32>
    %c15_i32 = arith.constant 15 : i32
    %12 = tpu.dynamic_rotate %3 by %c15_i32 dim 1 : vector<8x256xf32>, i32 -> vector<8x256xf32>
    %c2 = arith.constant 2 : index
    %c0_5 = arith.constant 0 : index
    %13 = vector.load %arg2[%c2, %c0_5] : memref<9x256xf32, #tpu.memory_space<vmem>>, vector<1x256xf32>
    %14 = vector.broadcast %13 : vector<1x256xf32> to vector<8x256xf32>
    %15 = arith.mulf %12, %14 : vector<8x256xf32>
    %c1_i32 = arith.constant 1 : i32
    %16 = tpu.dynamic_rotate %3 by %c1_i32 dim 1 : vector<8x256xf32>, i32 -> vector<8x256xf32>
    %c3 = arith.constant 3 : index
    %c0_6 = arith.constant 0 : index
    %17 = vector.load %arg2[%c3, %c0_6] : memref<9x256xf32, #tpu.memory_space<vmem>>, vector<1x256xf32>
    %18 = vector.broadcast %17 : vector<1x256xf32> to vector<8x256xf32>
    %19 = arith.mulf %16, %18 : vector<8x256xf32>
    %c255_i32 = arith.constant 255 : i32
    %20 = tpu.dynamic_rotate %3 by %c255_i32 dim 1 : vector<8x256xf32>, i32 -> vector<8x256xf32>
    %c5 = arith.constant 5 : index
    %c0_7 = arith.constant 0 : index
    %21 = vector.load %arg2[%c5, %c0_7] : memref<9x256xf32, #tpu.memory_space<vmem>>, vector<1x256xf32>
    %22 = vector.broadcast %21 : vector<1x256xf32> to vector<8x256xf32>
    %23 = arith.mulf %20, %22 : vector<8x256xf32>
    %c241_i32 = arith.constant 241 : i32
    %24 = tpu.dynamic_rotate %3 by %c241_i32 dim 1 : vector<8x256xf32>, i32 -> vector<8x256xf32>
    %c6 = arith.constant 6 : index
    %c0_8 = arith.constant 0 : index
    %25 = vector.load %arg2[%c6, %c0_8] : memref<9x256xf32, #tpu.memory_space<vmem>>, vector<1x256xf32>
    %26 = vector.broadcast %25 : vector<1x256xf32> to vector<8x256xf32>
    %27 = arith.mulf %24, %26 : vector<8x256xf32>
    %c240_i32 = arith.constant 240 : i32
    %28 = tpu.dynamic_rotate %3 by %c240_i32 dim 1 : vector<8x256xf32>, i32 -> vector<8x256xf32>
    %c7 = arith.constant 7 : index
    %c0_9 = arith.constant 0 : index
    %29 = vector.load %arg2[%c7, %c0_9] : memref<9x256xf32, #tpu.memory_space<vmem>>, vector<1x256xf32>
    %30 = vector.broadcast %29 : vector<1x256xf32> to vector<8x256xf32>
    %31 = arith.mulf %28, %30 : vector<8x256xf32>
    %c239_i32 = arith.constant 239 : i32
    %32 = tpu.dynamic_rotate %3 by %c239_i32 dim 1 : vector<8x256xf32>, i32 -> vector<8x256xf32>
    %c8 = arith.constant 8 : index
    %c0_10 = arith.constant 0 : index
    %33 = vector.load %arg2[%c8, %c0_10] : memref<9x256xf32, #tpu.memory_space<vmem>>, vector<1x256xf32>
    %34 = vector.broadcast %33 : vector<1x256xf32> to vector<8x256xf32>
    %35 = arith.mulf %32, %34 : vector<8x256xf32>
    %36 = tpu.concatenate %7, %11, %15, %19, %3, %23, %27, %31, %35 in 0 : vector<8x256xf32>, vector<8x256xf32>, vector<8x256xf32>, vector<8x256xf32>, vector<8x256xf32>, vector<8x256xf32>, vector<8x256xf32>, vector<8x256xf32>, vector<8x256xf32> -> vector<72x256xf32>
    %c0_11 = arith.constant 0 : index
    %c0_12 = arith.constant 0 : index
    %37 = vector.load %arg3[%c0_11, %c0_12] : memref<8x72xf32, #tpu.memory_space<vmem>>, vector<8x72xf32>
    %cst_13 = arith.constant dense<0.000000e+00> : vector<8x256xf32>
    %38 = tpu.matmul %37, %36, %cst_13 {dimension_numbers = #tpu.dot_dimension_numbers<[1], [0], [0], [1], [0, 0, 1, 1], [], []>} : vector<8x72xf32>, vector<72x256xf32>, vector<8x256xf32> -> vector<8x256xf32>
    %c0_14 = arith.constant 0 : index
    %c0_15 = arith.constant 0 : index
    %39 = vector.load %arg4[%c0_14, %c0_15] : memref<8x1xf32, #tpu.memory_space<vmem>>, vector<8x1xf32>
    %40 = vector.broadcast %39 : vector<8x1xf32> to vector<8x256xf32>
    %41 = arith.addf %38, %40 : vector<8x256xf32>
    %cst_16 = arith.constant 0.000000e+00 : f32
    %42 = vector.broadcast %cst_16 : f32 to vector<8x256xf32>
    %43 = arith.cmpf oge, %41, %42 : vector<8x256xf32>
    %cst_17 = arith.constant 1.000000e-01 : f32
    %44 = vector.broadcast %cst_17 : f32 to vector<8x256xf32>
    %45 = arith.mulf %44, %41 : vector<8x256xf32>
    %46 = arith.select %43, %41, %45 : vector<8x256xi1>, vector<8x256xf32>
    %c0_18 = arith.constant 0 : index
    %c0_19 = arith.constant 0 : index
    %c0_20 = arith.constant 0 : index
    %47 = vector.load %arg1[%c0_18, %c0_19, %c0_20] : memref<1x4x256xf32, #tpu.memory_space<vmem>>, vector<1x4x256xf32>
    %48 = vector.shape_cast %47 : vector<1x4x256xf32> to vector<4x256xf32>
    %c0_21 = arith.constant 0 : index
    %c0_22 = arith.constant 0 : index
    %c0_23 = arith.constant 0 : index
    %49 = vector.load %arg5[%c0_21, %c0_22, %c0_23] : memref<1x12x256xf32, #tpu.memory_space<vmem>>, vector<1x4x256xf32>
    %50 = vector.shape_cast %49 : vector<1x4x256xf32> to vector<4x256xf32>
    %51 = vector.shape_cast %48 : vector<4x256xf32> to vector<1x4x256xf32>
    tpu.vector_store %arg5[%c0_21, %c0_22, %c0_23], %51 {strides = array<i32>} : memref<1x12x256xf32, #tpu.memory_space<vmem>>, vector<1x4x256xf32>,
    %c0_24 = arith.constant 0 : index
    %c4 = arith.constant 4 : index
    %c0_25 = arith.constant 0 : index
    %52 = vector.load %arg5[%c0_24, %c4, %c0_25] : memref<1x12x256xf32, #tpu.memory_space<vmem>>, vector<1x8x256xf32>
    %53 = vector.shape_cast %52 : vector<1x8x256xf32> to vector<8x256xf32>
    %54 = vector.shape_cast %46 : vector<8x256xf32> to vector<1x8x256xf32>
    tpu.vector_store %arg5[%c0_24, %c4, %c0_25], %54 {strides = array<i32>} : memref<1x12x256xf32, #tpu.memory_space<vmem>>, vector<1x8x256xf32>,
    return
  }
  func.func @transform_0(%arg0: i32) -> (i32, i32, i32) {
    %c0_i32 = arith.constant 0 : i32
    %c0_i32_0 = arith.constant 0 : i32
    %c0_i32_1 = arith.constant 0 : i32
    return %arg0, %c0_i32, %c0_i32_0 : i32, i32, i32
  }
  func.func @transform_1(%arg0: i32) -> (i32, i32) {
    %c0_i32 = arith.constant 0 : i32
    %c0_i32_0 = arith.constant 0 : i32
    %c0_i32_1 = arith.constant 0 : i32
    return %c0_i32, %c0_i32_0 : i32, i32
  }
  func.func @transform_2(%arg0: i32) -> (i32, i32) {
    %c0_i32 = arith.constant 0 : i32
    %c0_i32_0 = arith.constant 0 : i32
    %c0_i32_1 = arith.constant 0 : i32
    return %c0_i32, %c0_i32_0 : i32, i32
  }
  func.func @transform_3(%arg0: i32) -> (i32, i32) {
    %c0_i32 = arith.constant 0 : i32
    %c0_i32_0 = arith.constant 0 : i32
    %c0_i32_1 = arith.constant 0 : i32
    return %c0_i32, %c0_i32_0 : i32, i32
  }
  func.func @transform_4(%arg0: i32) -> (i32, i32, i32) {
    %c0_i32 = arith.constant 0 : i32
    %c0_i32_0 = arith.constant 0 : i32
    %c0_i32_1 = arith.constant 0 : i32
    return %arg0, %c0_i32, %c0_i32_0 : i32, i32, i32
  }
}

</mosaic_0001>

<llo_original>
// kernel: tpu_custom_call.1
$region0: #{tpu_custom_call.1}
  #allocation0 [shape = 'u32[]', space=smem, size = 0x4, offset = 0x4, fixed_abs, tag = 'smem constant byte address 0x4 - core index']
  #allocation1 [shape = 'u32[72,128]{1,0:T(1,128)}', space=vmem, size = 0x9000, scoped, tag = 'internal scratch']
  %s0 = inlined_call_operand.hbm [shape: f32[2,4,256], index: 0, kind: input, shape index: {}]
  %s1 = inlined_call_operand.hbm [shape: f32[9,256], index: 1, kind: input, shape index: {}]
  %s2 = inlined_call_operand.vmem [shape: f32[8,72], index: 2, kind: input, shape index: {}]
  %s3 = inlined_call_operand.vmem [shape: f32[8,1], index: 3, kind: input, shape index: {}]
  %s4 = inlined_call_operand.vmem [shape: f32[2,12,256], index: 4, kind: output, shape index: {}]
  %s5 = sld [smem:[#allocation0]]
  $region57: #{tpu_custom_call.1} parent=0
    _
  %s7 = ssub.s32 1, %s5
  %s8 = scalar_select 0, %s7, %s5
  $region1: #{tpu_custom_call.1} parent=0
    #allocation2 [shape = 'u8[8192]{0}', space=vmem, size = 0x2000, scoped, tag = 'input window, operand 0']
    #allocation3 [shape = 's32[2]{0}', space=sflag, size = 0x8, scoped, tag = 'scoped memory for tpu_custom_call.1']
    #allocation4 [shape = 'u8[16384]{0}', space=vmem, size = 0x4000, scoped, tag = 'input window, operand 1, single buffered']
    #allocation5 [shape = 's32[1]{0}', space=sflag, size = 0x4, scoped, tag = 'scoped memory for tpu_custom_call.1']
    %9 = vsyncpa [#allocation3], 0
    %s10 = scalar_lea.sflag [#allocation3], 1
    %11 = vsyncpa %s10, 0
    %12 = vsyncpa [#allocation5], 0
    loop: start=0, step=1, limit=4
    $region2: #{tpu_custom_call.1} parent=1 // loop_pre_header
      _
    $region3: #{tpu_custom_call.1} parent=1 // loop_header
      %s14 = sphi 0, %s18
      %p15 = scmp.ge.s32.totalorder %s14, 4
      %s24 = sphi 0, %s26
      %s27 = sphi 0, %s24
      %s28 = sphi 0, %s27
      %s44 = sphi 0, %s28
      %s48 = sphi 0, %s48
      %s50 = sphi 0, %s48
      %s51 = sphi 0, %s50
      %s65 = sphi 0, %s51
      %s69 = sphi 0, %s69
      %s71 = sphi 0, %s69
      %s72 = sphi 0, %s71
      %s86 = sphi 0, %s72
      %s90 = sphi 0, %s90
      %s92 = sphi 0, %s90
      %s93 = sphi 0, %s92
      %s107 = sphi 0, %s93
      %s113 = sphi 0, %s115
      %s116 = sphi 0, %s113
      %s117 = sphi 0, %s116
      %s133 = sphi 0, %s117
    $region4: #{tpu_custom_call.1} parent=1 // loop_header_branch
      %17 = sbr.rel (%p15) target = $region8
    $region5: #{tpu_custom_call.1} parent=1 // loop_body
      %s19 = ssub.s32 %s14, 1
      %s20 = ssub.s32 %s14, 2
      %s21 = sadd.s32 %s14, 1
      %s22 = ssub.s32 %s14, %s21
      %p23 = scmp.eq.s32.totalorder %s22, 0
      %s25 = sadd.s32 %s24, 1
      %s26 = scalar_select %p23, %s24, %s25
      %p29 = pneg %p23
      %p30 = scmp.eq.s32.totalorder %s14, 1
      %p31 = por %p29, %p30
      %p32 = scmp.ne.s32.totalorder %s24, %s27
      %p33 = scmp.eq.s32.totalorder %s14, 0
      %p34 = por %p32, %p33
      %p35 = scmp.ne.s32.totalorder %s24, %s27
      %p36 = scmp.eq.s32.totalorder %s19, 1
      %p37 = por %p35, %p36
      %p38 = scmp.ne.s32.totalorder %s27, %s28
      %p39 = scmp.eq.s32.totalorder %s19, 0
      %p40 = por %p38, %p39
      %p41 = scmp.ne.s32.totalorder %s27, %s28
      %p42 = scmp.eq.s32.totalorder %s20, 1
      %p43 = por %p41, %p42
      %p45 = scmp.ne.s32.totalorder %s28, %s44
      %p46 = scmp.eq.s32.totalorder %s20, 0
      %p47 = por %p45, %p46
      %s49 = sadd.s32 %s48, 1
      %p52 = scmp.eq.s32.totalorder %s14, 1
      %p53 = scmp.ne.s32.totalorder %s48, %s50
      %p54 = scmp.eq.s32.totalorder %s14, 0
      %p55 = por %p53, %p54
      %p56 = scmp.ne.s32.totalorder %s48, %s50
      %p57 = scmp.eq.s32.totalorder %s19, 1
      %p58 = por %p56, %p57
      %p59 = scmp.ne.s32.totalorder %s50, %s51
      %p60 = scmp.eq.s32.totalorder %s19, 0
      %p61 = por %p59, %p60
      %p62 = scmp.ne.s32.totalorder %s50, %s51
      %p63 = scmp.eq.s32.totalorder %s20, 1
      %p64 = por %p62, %p63
      %p66 = scmp.ne.s32.totalorder %s51, %s65
      %p67 = scmp.eq.s32.totalorder %s20, 0
      %p68 = por %p66, %p67
      %s70 = sadd.s32 %s69, 1
      %p73 = scmp.eq.s32.totalorder %s14, 1
      %p74 = scmp.ne.s32.totalorder %s69, %s71
      %p75 = scmp.eq.s32.totalorder %s14, 0
      %p76 = por %p74, %p75
      %p77 = scmp.ne.s32.totalorder %s69, %s71
      %p78 = scmp.eq.s32.totalorder %s19, 1
      %p79 = por %p77, %p78
      %p80 = scmp.ne.s32.totalorder %s71, %s72
      %p81 = scmp.eq.s32.totalorder %s19, 0
      %p82 = por %p80, %p81
      %p83 = scmp.ne.s32.totalorder %s71, %s72
      %p84 = scmp.eq.s32.totalorder %s20, 1
      %p85 = por %p83, %p84
      %p87 = scmp.ne.s32.totalorder %s72, %s86
      %p88 = scmp.eq.s32.totalorder %s20, 0
      %p89 = por %p87, %p88
      %s91 = sadd.s32 %s90, 1
      %p94 = scmp.eq.s32.totalorder %s14, 1
      %p95 = scmp.ne.s32.totalorder %s90, %s92
      %p96 = scmp.eq.s32.totalorder %s14, 0
      %p97 = por %p95, %p96
      %p98 = scmp.ne.s32.totalorder %s90, %s92
      %p99 = scmp.eq.s32.totalorder %s19, 1
      %p100 = por %p98, %p99
      %p101 = scmp.ne.s32.totalorder %s92, %s93
      %p102 = scmp.eq.s32.totalorder %s19, 0
      %p103 = por %p101, %p102
      %p104 = scmp.ne.s32.totalorder %s92, %s93
      %p105 = scmp.eq.s32.totalorder %s20, 1
      %p106 = por %p104, %p105
      %p108 = scmp.ne.s32.totalorder %s93, %s107
      %p109 = scmp.eq.s32.totalorder %s20, 0
      %p110 = por %p108, %p109
      %s111 = ssub.s32 %s14, %s21
      %p112 = scmp.eq.s32.totalorder %s111, 0
      %s114 = sadd.s32 %s113, 1
      %s115 = scalar_select %p112, %s113, %s114
      %p118 = pneg %p112
      %p119 = scmp.eq.s32.totalorder %s14, 1
      %p120 = por %p118, %p119
      %p121 = scmp.ne.s32.totalorder %s113, %s116
      %p122 = scmp.eq.s32.totalorder %s14, 0
      %p123 = por %p121, %p122
      %p124 = scmp.ne.s32.totalorder %s113, %s116
      %p125 = scmp.eq.s32.totalorder %s19, 1
      %p126 = por %p124, %p125
      %p127 = scmp.ne.s32.totalorder %s116, %s117
      %p128 = scmp.eq.s32.totalorder %s19, 0
      %p129 = por %p127, %p128
      %p130 = scmp.ne.s32.totalorder %s116, %s117
      %p131 = scmp.eq.s32.totalorder %s20, 1
      %p132 = por %p130, %p131
      %p134 = scmp.ne.s32.totalorder %s117, %s133
      %p135 = scmp.eq.s32.totalorder %s20, 0
      %p136 = por %p134, %p135
      %p137 = scmp.le.s32.totalorder 1, %s14
      %p138 = scmp.lt.s32.totalorder %s14, 3
      %p139 = pnand %p137, %p138
      %p140 = pneg %p139
      // Predicated region
      $region9: #{tpu_custom_call.1} parent=5 // pred_check
        _
      $region10: #{tpu_custom_call.1} parent=5 // pred_check_branch
        %142 = sbr.rel (%p139) target = $region12
      $region11: #{tpu_custom_call.1} parent=5 // pred_region
        %s143 = ssub.s32 %s14, 1
        // Predicated region
        $region13: #{tpu_custom_call.1} parent=11 // pred_check
          %p144 = pneg %p61
        $region14: #{tpu_custom_call.1} parent=11 // pred_check_branch
          %146 = sbr.rel (%p144) target = $region16
        $region15: #{tpu_custom_call.1} parent=11 // pred_region
          %148 = vsyncadd [#allocation5], 0
          %s149 = sshll.u32 %s1, 4
          %s150 = int_to_ptr.hbm [resolvable:$true] %s149
          %s151 = sshll.u32 [#allocation4], 4
          %s152 = int_to_ptr.vmem [resolvable:$true] %s151
          %157 = dma.hbm_to_vmem [thread:$0]  %s150, 512, %s152, [#allocation5], 256, 256, 16
        $region16: #{tpu_custom_call.1} parent=11 // pred_fallthru
          _
        // Predicated region
        $region17: #{tpu_custom_call.1} parent=11 // pred_check
          %p158 = pneg %p82
        $region18: #{tpu_custom_call.1} parent=11 // pred_check_branch
          %160 = sbr.rel (%p158) target = $region20
        $region19: #{tpu_custom_call.1} parent=11 // pred_region
          _
        $region20: #{tpu_custom_call.1} parent=11 // pred_fallthru
          _
        // Predicated region
        $region21: #{tpu_custom_call.1} parent=11 // pred_check
          %p161 = pneg %p103
        $region22: #{tpu_custom_call.1} parent=11 // pred_check_branch
          %163 = sbr.rel (%p161) target = $region24
        $region23: #{tpu_custom_call.1} parent=11 // pred_region
          _
        $region24: #{tpu_custom_call.1} parent=11 // pred_fallthru
          _
      $region12: #{tpu_custom_call.1} parent=5 // pred_fallthru
        _
      %p164 = scmp.lt.s32.totalorder %s14, 2
      // Predicated region
      $region25: #{tpu_custom_call.1} parent=5 // pred_check
        %p165 = pneg %p164
      $region26: #{tpu_custom_call.1} parent=5 // pred_check_branch
        %167 = sbr.rel (%p165) target = $region28
      $region27: #{tpu_custom_call.1} parent=5 // pred_region
        // Predicated region
        $region29: #{tpu_custom_call.1} parent=27 // pred_check
          %p168 = pneg %p34
        $region30: #{tpu_custom_call.1} parent=27 // pred_check_branch
          %170 = sbr.rel (%p168) target = $region32
        $region31: #{tpu_custom_call.1} parent=27 // pred_region
          %s171 = sand.u32 %s24, 1
          %s172 = scalar_lea.sflag [#allocation3], %s171
          %s173 = sand.u32 %s24, 1
          %s174 = smul.addr %s173, 8
          %s175 = scalar_lea.vmem [#allocation2], %s174
          %177 = vsyncadd %s172, 0
          %s178 = smul.addr %s14, 2
          %s179 = smul.addr %s178, 4
          %s180 = scalar_lea.hbm %s0, %s179
          %s182 = sshll.u32 %s180, 4
          %s183 = int_to_ptr.hbm [resolvable:$true] %s182
          %s184 = sshll.u32 %s175, 4
          %s185 = int_to_ptr.vmem [resolvable:$true] %s184
          %187 = dma.hbm_to_vmem [thread:$0]  %s183, 128, %s185, %s172
        $region32: #{tpu_custom_call.1} parent=27 // pred_fallthru
          _
      $region28: #{tpu_custom_call.1} parent=5 // pred_fallthru
        _
      %p188 = scmp.le.s32.totalorder 1, %s14
      %p189 = scmp.lt.s32.totalorder %s14, 3
      %p190 = pnand %p188, %p189
      %p191 = pneg %p190
      // Predicated region
      $region33: #{tpu_custom_call.1} parent=5 // pred_check
        _
      $region34: #{tpu_custom_call.1} parent=5 // pred_check_branch
        %193 = sbr.rel (%p190) target = $region36
      $region35: #{tpu_custom_call.1} parent=5 // pred_region
        %s194 = ssub.s32 %s14, 1
        %s195 = sand.u32 %s27, 1
        %s196 = scalar_lea.sflag [#allocation3], %s195
        %s197 = sand.u32 %s27, 1
        %s198 = smul.addr %s197, 8
        %s199 = scalar_lea.vmem [#allocation2], %s198
        // Predicated region
        $region37: #{tpu_custom_call.1} parent=35 // pred_check
          %p200 = pneg %p40
        $region38: #{tpu_custom_call.1} parent=35 // pred_check_branch
          %202 = sbr.rel (%p200) target = $region40
        $region39: #{tpu_custom_call.1} parent=35 // pred_region
          %204 = dma.done %s196, 128
        $region40: #{tpu_custom_call.1} parent=35 // pred_fallthru
          _
        // Predicated region
        $region41: #{tpu_custom_call.1} parent=35 // pred_check
          %p205 = pneg %p61
        $region42: #{tpu_custom_call.1} parent=35 // pred_check_branch
          %207 = sbr.rel (%p205) target = $region44
        $region43: #{tpu_custom_call.1} parent=35 // pred_region
          %209 = dma.done [#allocation5], 512
        $region44: #{tpu_custom_call.1} parent=35 // pred_fallthru
          _
        %s210 = sand.u32 %s27, 1
        %s211 = scalar_lea.sflag [#allocation3], %s210
        %s212 = sand.u32 %s27, 1
        %s213 = smul.addr %s212, 8
        %s214 = scalar_lea.vmem [#allocation2], %s213
        %p215 = pneg %p40
        %p216 = pneg %p37
        %p217 = pneg %p61
        %p218 = pneg %p58
        %p219 = pneg %p82
        %p220 = pneg %p79
        %p221 = pneg %p103
        %p222 = pneg %p100
        %p223 = pneg %p129
        %p224 = pneg %p126
        %p225 = scmp.lt.s32.totalorder %s19, 1
        %s226 = scalar_select %p225, %s19, 1
        %s227 = smul.addr %s226, 4
        %s228 = smul.addr %s227, 8
        %s229 = scalar_lea.vmem %s4, %s228
        %p230 = scmp.lt.s32.totalorder %s19, 1
        %s231 = scalar_select %p230, %s19, 1
        %s232 = smul.addr %s231, 4
        %s233 = smul.addr %s232, 8
        %s234 = scalar_lea.vmem %s4, %s233
        %v235 = vld [vmem:[%s199] sm:$0xff]
        %237 = vst [vmem:[#allocation1] ss:$2 sm:$0xff] %v235
        %v238 = vld.sshfl [vmem:[#allocation1] sm:$0xff pattern:$0x75316420]
        %v239 = vld.sshfl [vmem:[#allocation1 + $0x8] sm:$0xff pattern:$0x75316420]
        %vm242 = vcmask 1043456
        %v243 = vsel %vm242, %v238, 0.0
        %v244 = vsel %vm242, %v239, 0.0
        %245 = vrot.lane.b32.xlu0 %v243, 17
        %v246 = vpop.permute.xlu0 %245
        %247 = vrot.lane.b32.xlu0 %v244, 17
        %v248 = vpop.permute.xlu0 %247
        %v249 = vlaneseq
        %v250 = vand.u32 %v249, 127
        %vm251 = vcmp.lt.s32.totalorder %v250, 17
        %v252 = vsel %vm251, %v246, %v248
        %v253 = vsel %vm251, %v248, %v246
        %v254 = vld [vmem:[#allocation4] ss:$8 sm:$0x3]
        %v256 = vperm.slane %v254, 0
        %v257 = vperm.slane %v254, 1
        %v260 = vmul.f32 %v253, %v256
        %v261 = vmul.f32 %v252, %v257
        %262 = vrot.lane.b32.xlu0 %v243, 16
        %v263 = vpop.permute.xlu0 %262
        %264 = vrot.lane.b32.xlu0 %v244, 16
        %v265 = vpop.permute.xlu0 %264
        %vm266 = vcmp.lt.s32.totalorder %v250, 16
        %v267 = vsel %vm266, %v263, %v265
        %v268 = vsel %vm266, %v265, %v263
        %s269 = scalar_lea.vmem [#allocation4], 1
        %v270 = vld [vmem:[%s269] ss:$8 sm:$0x3]
        %v272 = vperm.slane %v270, 0
        %v273 = vperm.slane %v270, 1
        %v276 = vmul.f32 %v268, %v272
        %v277 = vmul.f32 %v267, %v273
        %278 = vrot.lane.b32.xlu0 %v243, 15
        %v279 = vpop.permute.xlu0 %278
        %280 = vrot.lane.b32.xlu0 %v244, 15
        %v281 = vpop.permute.xlu0 %280
        %vm282 = vcmp.lt.s32.totalorder %v250, 15
        %v283 = vsel %vm282, %v279, %v281
        %v284 = vsel %vm282, %v281, %v279
        %s285 = scalar_lea.vmem [#allocation4], 2
        %v286 = vld [vmem:[%s285] ss:$8 sm:$0x3]
        %v288 = vperm.slane %v286, 0
        %v289 = vperm.slane %v286, 1
        %v292 = vmul.f32 %v284, %v288
        %v293 = vmul.f32 %v283, %v289
        %294 = vrot.lane.b32.xlu0 %v243, 1
        %v295 = vpop.permute.xlu0 %294
        %296 = vrot.lane.b32.xlu0 %v244, 1
        %v297 = vpop.permute.xlu0 %296
        %vm298 = vcmp.lt.s32.totalorder %v250, 1
        %v299 = vsel %vm298, %v295, %v297
        %v300 = vsel %vm298, %v297, %v295
        %s301 = scalar_lea.vmem [#allocation4], 3
        %v302 = vld [vmem:[%s301] ss:$8 sm:$0x3]
        %v304 = vperm.slane %v302, 0
        %v305 = vperm.slane %v302, 1
        %v308 = vmul.f32 %v300, %v304
        %v309 = vmul.f32 %v299, %v305
        %310 = vrot.lane.b32.xlu0 %v243, 127
        %v311 = vpop.permute.xlu0 %310
        %312 = vrot.lane.b32.xlu0 %v244, 127
        %v313 = vpop.permute.xlu0 %312
        %vm314 = vcmp.lt.s32.totalorder %v250, 127
        %v315 = vsel %vm314, %v311, %v313
        %v316 = vsel %vm314, %v313, %v311
        %s317 = scalar_lea.vmem [#allocation4], 5
        %v318 = vld [vmem:[%s317] ss:$8 sm:$0x3]
        %v320 = vperm.slane %v318, 0
        %v321 = vperm.slane %v318, 1
        %v324 = vmul.f32 %v315, %v320
        %v325 = vmul.f32 %v316, %v321
        %326 = vrot.lane.b32.xlu0 %v243, 113
        %v327 = vpop.permute.xlu0 %326
        %328 = vrot.lane.b32.xlu0 %v244, 113
        %v329 = vpop.permute.xlu0 %328
        %vm330 = vcmp.lt.s32.totalorder %v250, 113
        %v331 = vsel %vm330, %v327, %v329
        %v332 = vsel %vm330, %v329, %v327
        %s333 = scalar_lea.vmem [#allocation4], 6
        %v334 = vld [vmem:[%s333] ss:$8 sm:$0x3]
        %v336 = vperm.slane %v334, 0
        %v337 = vperm.slane %v334, 1
        %v340 = vmul.f32 %v331, %v336
        %v341 = vmul.f32 %v332, %v337
        %342 = vrot.lane.b32.xlu0 %v243, 112
        %v343 = vpop.permute.xlu0 %342
        %344 = vrot.lane.b32.xlu0 %v244, 112
        %v345 = vpop.permute.xlu0 %344
        %vm346 = vcmp.lt.s32.totalorder %v250, 112
        %v347 = vsel %vm346, %v343, %v345
        %v348 = vsel %vm346, %v345, %v343
        %s349 = scalar_lea.vmem [#allocation4], 7
        %v350 = vld [vmem:[%s349] ss:$8 sm:$0x3]
        %v352 = vperm.slane %v350, 0
        %v353 = vperm.slane %v350, 1
        %v356 = vmul.f32 %v347, %v352
        %v357 = vmul.f32 %v348, %v353
        %358 = vrot.lane.b32.xlu0 %v243, 111
        %v359 = vpop.permute.xlu0 %358
        %360 = vrot.lane.b32.xlu0 %v244, 111
        %v361 = vpop.permute.xlu0 %360
        %vm362 = vcmp.lt.s32.totalorder %v250, 111
        %v363 = vsel %vm362, %v359, %v361
        %v364 = vsel %vm362, %v361, %v359
        %s365 = scalar_lea.vmem [#allocation4], 16
        %v366 = vld [vmem:[%s365] ss:$8 sm:$0x3]
        %v368 = vperm.slane %v366, 0
        %v369 = vperm.slane %v366, 1
        %v372 = vmul.f32 %v363, %v368
        %v373 = vmul.f32 %v364, %v369
        %v374 = vld [vmem:[%s2] sm:$0xff]
        %v375 = vld [vmem:[%s3] sm:$0xff]
        %377 = vset.pattern.permute.xlu0 0
        %378 = vperm.xlu0 %377, %v375
        %v379 = vpop.permute.xlu0 %378
        %vm381 = vcmask 588800
        %v383 = vsel %vm381, %v374, 0
        %385 = vmatpush.msra.mxu0 0.0
        %386 = vmatpush.msra.mxu0 0.0
        %387 = vmatpush.msra.mxu0 0.0
        %388 = vmatpush.msra.mxu0 0.0
        %389 = vmatpush.msra.mxu0 0.0
        %390 = vmatpush.msra.mxu0 0.0
        %391 = vmatpush.msra.mxu0 0.0
        %392 = vmatpush.msra.mxu0 %v372
        %393 = vmatpush.msra.mxu0 %v356
        %394 = vmatpush.msra.mxu0 %v340
        %395 = vmatpush.msra.mxu0 %v324
        %396 = vmatpush.msra.mxu0 %v243
        %397 = vmatpush.msra.mxu0 %v308
        %398 = vmatpush.msra.mxu0 %v292
        %399 = vmatpush.msra.mxu0 %v276
        %400 = vmatpush.msra.mxu0 %v260
        %401 = vmatmul.f32.gmra.mxu0 %v383
        %v402 = vpop.f32.mrf.mxu0
        %v403 = vadd.f32 %v379, %v402
        %404 = vdwg.mxu0
        %405 = vmatpush.msra.mxu0 0.0
        %406 = vmatpush.msra.mxu0 0.0
        %407 = vmatpush.msra.mxu0 0.0
        %408 = vmatpush.msra.mxu0 0.0
        %409 = vmatpush.msra.mxu0 0.0
        %410 = vmatpush.msra.mxu0 0.0
        %411 = vmatpush.msra.mxu0 0.0
        %412 = vmatpush.msra.mxu0 %v373
        %413 = vmatpush.msra.mxu0 %v357
        %414 = vmatpush.msra.mxu0 %v341
        %415 = vmatpush.msra.mxu0 %v325
        %416 = vmatpush.msra.mxu0 %v244
        %417 = vmatpush.msra.mxu0 %v309
        %418 = vmatpush.msra.mxu0 %v293
        %419 = vmatpush.msra.mxu0 %v277
        %420 = vmatpush.msra.mxu0 %v261
        %421 = vmatmul.f32.gmra.mxu0 %v383
        %v422 = vpop.f32.mrf.mxu0
        %v423 = vadd.f32 %v379, %v422
        %424 = vdwg.mxu0
        %vm425 = vcmp.ge.f32.partialorder %v403, 0.0
        %vm426 = vcmp.ge.f32.partialorder %v423, 0.0
        %v427 = vmul.f32 %v403, 0.1
        %v428 = vmul.f32 %v423, 0.1
        %v429 = vsel %vm425, %v403, %v427
        %v430 = vsel %vm426, %v423, %v428
        %431 = vst [vmem:[#allocation1] ss:$2 sm:$0xff] %v235
        %v432 = vld.sshfl [vmem:[#allocation1] sm:$0xff pattern:$0x75316420]
        %v433 = vld.sshfl [vmem:[#allocation1 + $0x8] sm:$0xff pattern:$0x75316420]
        %436 = vst [vmem:[%s234] sm:$0xf] %v432
        %437 = vst [vmem:[%s234 + $0x8] sm:$0xf] %v433
        %v440 = vrot.slane %v429, 4
        %v441 = vrot.slane %v430, 4
        %444 = vst [vmem:[%s234] sm:$0xf0] %v440
        %445 = vst [vmem:[%s234 + $0x8] sm:$0xf0] %v441
        %446 = vst [vmem:[%s234 + $0x10] sm:$0xf] %v440
        %447 = vst [vmem:[%s234 + $0x18] sm:$0xf] %v441
        %p448 = scmp.lt.s32.totalorder %s19, 1
        %s449 = scalar_select %p448, %s19, 1
        %s450 = smul.addr %s449, 4
        %s451 = smul.addr %s450, 8
        %s452 = scalar_lea.vmem %s4, %s451
        // Predicated region
        $region45: #{tpu_custom_call.1} parent=35 // pred_check
          %p453 = pneg %p126
        $region46: #{tpu_custom_call.1} parent=35 // pred_check_branch
          %455 = sbr.rel (%p453) target = $region48
        $region47: #{tpu_custom_call.1} parent=35 // pred_region
          _
        $region48: #{tpu_custom_call.1} parent=35 // pred_fallthru
          _
      $region36: #{tpu_custom_call.1} parent=5 // pred_fallthru
        _
      %p456 = scmp.le.s32.totalorder 2, %s14
      // Predicated region
      $region49: #{tpu_custom_call.1} parent=5 // pred_check
        %p457 = pneg %p456
      $region50: #{tpu_custom_call.1} parent=5 // pred_check_branch
        %459 = sbr.rel (%p457) target = $region52
      $region51: #{tpu_custom_call.1} parent=5 // pred_region
        %s460 = ssub.s32 %s14, 2
        // Predicated region
        $region53: #{tpu_custom_call.1} parent=51 // pred_check
          %p461 = pneg %p132
        $region54: #{tpu_custom_call.1} parent=51 // pred_check_branch
          %463 = sbr.rel (%p461) target = $region56
        $region55: #{tpu_custom_call.1} parent=51 // pred_region
          %p464 = scmp.lt.s32.totalorder %s20, 1
          %s465 = scalar_select %p464, %s20, 1
          %s466 = smul.addr %s465, 4
          %s467 = smul.addr %s466, 8
          %s468 = scalar_lea.vmem %s4, %s467
        $region56: #{tpu_custom_call.1} parent=51 // pred_fallthru
          _
      $region52: #{tpu_custom_call.1} parent=5 // pred_fallthru
        _
    $region6: #{tpu_custom_call.1} parent=1 // loop_footer
      %s18 = sadd.s32 1, %s14
    $region7: #{tpu_custom_call.1} parent=1 // loop_footer_branch
      %13 = sbr.rel target = $region3
    $region8: #{tpu_custom_call.1} parent=1 // loop_exit
      _
    %469 = vsyncpa [#allocation3], 1
    %s470 = scalar_lea.sflag [#allocation3], 1
    %471 = vsyncpa %s470, 1
    %472 = vsyncpa [#allocation5], 1

</llo_original>
